<compile_context>
chip_gen: v5e
topology: v5e:2x2
jax: 0.10.0
libtpu: 0.0.40
codegen_flags: <defaults>
</compile_context>

<pallas_src>
import functools

import jax
import jax.numpy as jnp
from jax.experimental import pallas as pl
from jax.experimental.pallas import tpu as pltpu

KH = KW = 3  # fixed 3x3 depthwise kernel, padding = 1


def _dwsep_kernel(x_ref, w_ref, o_ref, xp_ref, *, H, W, Cin):
    # x_ref : (1, Cin, H*W)          flattened NCHW image (dense rows, stride W)
    # w_ref : (9, Cout, Cin_p)       fused per-tap weights:
    #                                w[k, co, ci] = dw[ci, dy, dx] * pw[co, ci]
    # o_ref : (1, Cout, H*W)         dense flattened NCHW output
    # xp_ref: (Cin_p, (H+2)*W + 2)   row-padded flat image scratch (VMEM)
    cin_p = xp_ref.shape[0]
    Cout = o_ref.shape[1]
    L = H * W
    dtype = x_ref.dtype

    # ---- row-only zero padding: one bulk interior copy + tiny border zeroing.
    # Layout of xp (per channel): [1 zero][W zeros: row -1][H*W image][W zeros:
    # row H][1 zero].  Tap (dy,dx) for output p then reads xp[p + dy*W + dx].
    xp_ref[:, : W + 1] = jnp.zeros((cin_p, W + 1), dtype)
    xp_ref[:, (H + 1) * W + 1 :] = jnp.zeros((cin_p, W + 1), dtype)
    if cin_p != Cin:
        # Channel-pad sublanes must not hold stale VMEM (0 * NaN = NaN).
        xp_ref[Cin:, :] = jnp.zeros((cin_p - Cin, xp_ref.shape[1]), dtype)
    xp_ref[:Cin, W + 1 : W + 1 + L] = x_ref[0]

    # ---- column-padding masks (left / right image edge), built on the VPU.
    col = jax.lax.broadcasted_iota(jnp.int32, (1, L), 1) % W
    mask_l = (col != 0).astype(dtype)       # dx=0 reads x-1: invalid at x == 0
    mask_r = (col != W - 1).astype(dtype)   # dx=2 reads x+1: invalid at x == W-1

    # ---- nine accumulating MXU matmuls; tap slices are lane shifts of xp.
    # (M = Cout is tiny, so the matmuls are nowhere near the bottleneck; the
    # point is that no patch matrix is ever written back to VMEM.)
    acc = jnp.zeros((Cout, L), jnp.float32)
    for k in range(KH * KW):
        dy, dx = divmod(k, KW)
        off = dy * W + dx
        sl = xp_ref[:, off : off + L]                       # (Cin_p, L)
        if dx == 0:
            sl = sl * mask_l
        elif dx == KW - 1:
            sl = sl * mask_r
        acc = acc + jnp.dot(w_ref[k], sl, preferred_element_type=jnp.float32)

    o_ref[0] = acc.astype(o_ref.dtype)                      # lane-dense store


@jax.jit
def depthwise_separable_conv(x_nchw, dw_weight, pw_weight):
    """x_nchw: (N, Cin, H, W); dw_weight: (Cin, 1, 3, 3); pw_weight: (Cout, Cin, 1, 1)."""
    N, Cin, H, W = x_nchw.shape
    Cout = pw_weight.shape[0]
    L = H * W
    Lp = (H + 2) * W + 2
    cin_p = ((Cin + 7) // 8) * 8            # pad channels ONCE (not per tap)
    dtype = x_nchw.dtype

    # Fused per-tap weights: wf[k, co, ci] = dw[ci, 0, dy, dx] * pw[co, ci, 0, 0]
    dw_t = jnp.transpose(dw_weight[:, 0, :, :], (1, 2, 0)).reshape(KH * KW, Cin)
    pw_m = pw_weight[:, :, 0, 0]                              # (Cout, Cin)
    wf = dw_t[:, None, :] * pw_m[None, :, :]                  # (9, Cout, Cin)
    if cin_p != Cin:
        wf = jnp.pad(wf, ((0, 0), (0, 0), (0, cin_p - Cin)))
    wf = wf.astype(dtype)

    # NCHW consumed directly; (N, Cin, H, W) -> (N, Cin, H*W) is a free reshape.
    x_flat = x_nchw.reshape(N, Cin, L)

    # Explicit VMEM budget: double-buffered in/out/weight blocks + scratch,
    # with 2x margin, clamped to 48 MiB (safe on v7x's 64 MiB physical VMEM).
    itemsize = x_nchw.dtype.itemsize
    vmem_need = itemsize * (2 * Cin * L + 2 * Cout * L
                            + 2 * KH * KW * Cout * cin_p + cin_p * Lp)
    vmem_limit = int(min(max(2 * vmem_need, 32 * 1024 * 1024), 48 * 1024 * 1024))

    kernel = functools.partial(_dwsep_kernel, H=H, W=W, Cin=Cin)
    out_flat = pl.pallas_call(
        kernel,
        out_shape=jax.ShapeDtypeStruct((N, Cout, L), dtype),
        grid_spec=pltpu.PrefetchScalarGridSpec(
            num_scalar_prefetch=0,
            grid=(N,),
            in_specs=[
                pl.BlockSpec((1, Cin, L), lambda n: (n, 0, 0)),
                pl.BlockSpec((KH * KW, Cout, cin_p), lambda n: (0, 0, 0)),
            ],
            out_specs=pl.BlockSpec((1, Cout, L), lambda n: (n, 0, 0)),
            scratch_shapes=[
                pltpu.VMEM((cin_p, Lp), dtype),
            ],
        ),
        compiler_params=pltpu.CompilerParams(
            dimension_semantics=("parallel",),
            vmem_limit_bytes=vmem_limit),
    )(x_flat, wf)

    # Dense rows already -> plain (free) reshape, no strided crop / HBM pass.
    return out_flat.reshape(N, Cout, H, W)


def _reference(x_nchw, dw_weight, pw_weight):
    # Pure-JAX reference using lax conv (NCHW, OIHW), matching PyTorch semantics.
    Cin = x_nchw.shape[1]
    dw_out = jax.lax.conv_general_dilated(
        x_nchw, dw_weight, window_strides=(1, 1), padding=((1, 1), (1, 1)),
        feature_group_count=Cin,
        dimension_numbers=("NCHW", "OIHW", "NCHW"))
    return jax.lax.conv_general_dilated(
        dw_out, pw_weight, window_strides=(1, 1), padding=((0, 0), (0, 0)),
        dimension_numbers=("NCHW", "OIHW", "NCHW"))


if __name__ == "__main__":
    key = jax.random.PRNGKey(0)
    N, Cin, Cout, H, W = 2, 4, 8, 16, 16

    kx, kdw, kpw = jax.random.split(key, 3)
    x = jax.random.normal(kx, (N, Cin, H, W), dtype=jnp.float32)
    # Deterministic synthetic parameters (PyTorch Conv2d weight shapes).
    dw_weight = jax.random.normal(kdw, (Cin, 1, KH, KW), dtype=jnp.float32) * 0.1
    pw_weight = jax.random.normal(kpw, (Cout, Cin, 1, 1), dtype=jnp.float32) * 0.1

    out = depthwise_separable_conv(x, dw_weight, pw_weight)
    out = jax.block_until_ready(out)

    ref = _reference(x, dw_weight, pw_weight)
    assert out.shape == (N, Cout, H, W)
    assert jnp.allclose(out, ref, atol=5e-5, rtol=5e-5), \
        float(jnp.max(jnp.abs(out - ref)))

    print("KERNEL_OK")
</pallas_src>

<mosaic_0001>
module attributes {stable_mosaic.version = 11 : i64} {
  func.func @_dwsep_kernel(%arg0: i32, %arg1: memref<1x4x256xf32, #tpu.memory_space<vmem>>, %arg2: memref<9x8x8xf32, #tpu.memory_space<vmem>>, %arg3: memref<1x8x256xf32, #tpu.memory_space<vmem>>, %arg4: memref<8x290xf32, #tpu.memory_space<vmem>>) attributes {dimension_semantics = [#tpu.dimension_semantics<parallel>], iteration_bounds = array<i64: 2>, scalar_prefetch = 0 : i64, scratch_operands = 1 : i64, tpu.core_type = #tpu.core_type<tc>, window_params = [{transform_indices = @transform_0, window_bounds = array<i64: 1, 4, 256>}, {pipeline_mode = #tpu.pipeline_mode<synchronous>, transform_indices = @transform_1, window_bounds = array<i64: 9, 8, 8>}, {transform_indices = @transform_2, window_bounds = array<i64: 1, 8, 256>}]} {
    %cst = arith.constant 0.000000e+00 : f32
    %0 = vector.broadcast %cst : f32 to vector<8x17xf32>
    %c0 = arith.constant 0 : index
    %c0_0 = arith.constant 0 : index
    %1 = vector.load %arg4[%c0, %c0_0] : memref<8x290xf32, #tpu.memory_space<vmem>>, vector<8x17xf32>
    tpu.vector_store %arg4[%c0, %c0_0], %0 {strides = array<i32>} : memref<8x290xf32, #tpu.memory_space<vmem>>, vector<8x17xf32>,
    %cst_1 = arith.constant 0.000000e+00 : f32
    %2 = vector.broadcast %cst_1 : f32 to vector<8x17xf32>
    %c0_2 = arith.constant 0 : index
    %c273 = arith.constant 273 : index
    %3 = vector.load %arg4[%c0_2, %c273] : memref<8x290xf32, #tpu.memory_space<vmem>>, vector<8x17xf32>
    tpu.vector_store %arg4[%c0_2, %c273], %2 {strides = array<i32>} : memref<8x290xf32, #tpu.memory_space<vmem>>, vector<8x17xf32>,
    %cst_3 = arith.constant 0.000000e+00 : f32
    %4 = vector.broadcast %cst_3 : f32 to vector<4x290xf32>
    %c4 = arith.constant 4 : index
    %c0_4 = arith.constant 0 : index
    %5 = vector.load %arg4[%c4, %c0_4] : memref<8x290xf32, #tpu.memory_space<vmem>>, vector<4x290xf32>
    tpu.vector_store %arg4[%c4, %c0_4], %4 {strides = array<i32>} : memref<8x290xf32, #tpu.memory_space<vmem>>, vector<4x290xf32>,
    %c0_5 = arith.constant 0 : index
    %c0_6 = arith.constant 0 : index
    %c0_7 = arith.constant 0 : index
    %6 = vector.load %arg1[%c0_5, %c0_6, %c0_7] : memref<1x4x256xf32, #tpu.memory_space<vmem>>, vector<1x4x256xf32>
    %7 = vector.shape_cast %6 : vector<1x4x256xf32> to vector<4x256xf32>
    %c0_8 = arith.constant 0 : index
    %c17 = arith.constant 17 : index
    %8 = vector.load %arg4[%c0_8, %c17] : memref<8x290xf32, #tpu.memory_space<vmem>>, vector<4x256xf32>
    tpu.vector_store %arg4[%c0_8, %c17], %7 {strides = array<i32>} : memref<8x290xf32, #tpu.memory_space<vmem>>, vector<4x256xf32>,
    %9 = tpu.iota {dimensions = array<i32: 1>} : vector<1x256xi32>
    %c16_i32 = arith.constant 16 : i32
    %c0_i32 = arith.constant 0 : i32
    %10 = arith.cmpi eq, %c16_i32, %c0_i32 : i32
    %c1_i32 = arith.constant 1 : i32
    %11 = arith.select %10, %c1_i32, %c16_i32 : i32
    %12 = vector.broadcast %11 : i32 to vector<1x256xi32>
    %13 = arith.remsi %9, %12 : vector<1x256xi32>
    %c0_i32_9 = arith.constant 0 : i32
    %14 = vector.broadcast %c0_i32_9 : i32 to vector<1x256xi32>
    %15 = arith.cmpi ne, %13, %14 : vector<1x256xi32>
    %c0_i32_10 = arith.constant 0 : i32
    %16 = vector.broadcast %c0_i32_10 : i32 to vector<1x256xi32>
    %17 = arith.cmpi slt, %13, %16 : vector<1x256xi32>
    %c0_i32_11 = arith.constant 0 : i32
    %18 = arith.cmpi slt, %11, %c0_i32_11 : i32
    %19 = vector.broadcast %18 : i1 to vector<1x256xi1>
    %20 = vector.broadcast %19 : vector<1x256xi1> to vector<1x256xi1>
    %21 = arith.xori %17, %20 : vector<1x256xi1>
    %22 = arith.andi %21, %15 : vector<1x256xi1>
    %23 = vector.broadcast %11 : i32 to vector<1x256xi32>
    %24 = arith.addi %13, %23 : vector<1x256xi32>
    %25 = arith.select %22, %24, %13 : vector<1x256xi1>, vector<1x256xi32>
    %c0_i32_12 = arith.constant 0 : i32
    %26 = vector.broadcast %c0_i32_12 : i32 to vector<1x256xi32>
    %27 = arith.cmpi ne, %25, %26 : vector<1x256xi32>
    %28 = arith.extui %27 : vector<1x256xi1> to vector<1x256xi32>
    %29 = arith.sitofp %28 : vector<1x256xi32> to vector<1x256xf32>
    %c15_i32 = arith.constant 15 : i32
    %30 = vector.broadcast %c15_i32 : i32 to vector<1x256xi32>
    %31 = arith.cmpi ne, %25, %30 : vector<1x256xi32>
    %32 = arith.extui %31 : vector<1x256xi1> to vector<1x256xi32>
    %33 = arith.sitofp %32 : vector<1x256xi32> to vector<1x256xf32>
    %cst_13 = arith.constant 0.000000e+00 : f32
    %34 = vector.broadcast %cst_13 : f32 to vector<8x256xf32>
    %c0_14 = arith.constant 0 : index
    %c0_15 = arith.constant 0 : index
    %35 = vector.load %arg4[%c0_14, %c0_15] : memref<8x290xf32, #tpu.memory_space<vmem>>, vector<8x256xf32>
    %36 = vector.broadcast %29 : vector<1x256xf32> to vector<8x256xf32>
    %37 = arith.mulf %35, %36 : vector<8x256xf32>
    %c0_16 = arith.constant 0 : index
    %c0_17 = arith.constant 0 : index
    %c0_18 = arith.constant 0 : index
    %38 = vector.load %arg2[%c0_16, %c0_17, %c0_18] : memref<9x8x8xf32, #tpu.memory_space<vmem>>, vector<1x8x8xf32>
    %39 = vector.shape_cast %38 : vector<1x8x8xf32> to vector<8x8xf32>
    %cst_19 = arith.constant dense<0.000000e+00> : vector<8x256xf32>
    %40 = tpu.matmul %39, %37, %cst_19 {dimension_numbers = #tpu.dot_dimension_numbers<[1], [0], [0], [1], [0, 0, 1, 1], [], []>} : vector<8x8xf32>, vector<8x256xf32>, vector<8x256xf32> -> vector<8x256xf32>
    %41 = arith.addf %34, %40 : vector<8x256xf32>
    %c0_20 = arith.constant 0 : index
    %c1 = arith.constant 1 : index
    %42 = vector.load %arg4[%c0_20, %c1] : memref<8x290xf32, #tpu.memory_space<vmem>>, vector<8x256xf32>
    %c1_21 = arith.constant 1 : index
    %c0_22 = arith.constant 0 : index
    %c0_23 = arith.constant 0 : index
    %43 = vector.load %arg2[%c1_21, %c0_22, %c0_23] : memref<9x8x8xf32, #tpu.memory_space<vmem>>, vector<1x8x8xf32>
    %44 = vector.shape_cast %43 : vector<1x8x8xf32> to vector<8x8xf32>
    %cst_24 = arith.constant dense<0.000000e+00> : vector<8x256xf32>
    %45 = tpu.matmul %44, %42, %cst_24 {dimension_numbers = #tpu.dot_dimension_numbers<[1], [0], [0], [1], [0, 0, 1, 1], [], []>} : vector<8x8xf32>, vector<8x256xf32>, vector<8x256xf32> -> vector<8x256xf32>
    %46 = arith.addf %41, %45 : vector<8x256xf32>
    %c0_25 = arith.constant 0 : index
    %c2 = arith.constant 2 : index
    %47 = vector.load %arg4[%c0_25, %c2] : memref<8x290xf32, #tpu.memory_space<vmem>>, vector<8x256xf32>
    %48 = vector.broadcast %33 : vector<1x256xf32> to vector<8x256xf32>
    %49 = arith.mulf %47, %48 : vector<8x256xf32>
    %c2_26 = arith.constant 2 : index
    %c0_27 = arith.constant 0 : index
    %c0_28 = arith.constant 0 : index
    %50 = vector.load %arg2[%c2_26, %c0_27, %c0_28] : memref<9x8x8xf32, #tpu.memory_space<vmem>>, vector<1x8x8xf32>
    %51 = vector.shape_cast %50 : vector<1x8x8xf32> to vector<8x8xf32>
    %cst_29 = arith.constant dense<0.000000e+00> : vector<8x256xf32>
    %52 = tpu.matmul %51, %49, %cst_29 {dimension_numbers = #tpu.dot_dimension_numbers<[1], [0], [0], [1], [0, 0, 1, 1], [], []>} : vector<8x8xf32>, vector<8x256xf32>, vector<8x256xf32> -> vector<8x256xf32>
    %53 = arith.addf %46, %52 : vector<8x256xf32>
    %c0_30 = arith.constant 0 : index
    %c16 = arith.constant 16 : index
    %54 = vector.load %arg4[%c0_30, %c16] : memref<8x290xf32, #tpu.memory_space<vmem>>, vector<8x256xf32>
    %55 = vector.broadcast %29 : vector<1x256xf32> to vector<8x256xf32>
    %56 = arith.mulf %54, %55 : vector<8x256xf32>
    %c3 = arith.constant 3 : index
    %c0_31 = arith.constant 0 : index
    %c0_32 = arith.constant 0 : index
    %57 = vector.load %arg2[%c3, %c0_31, %c0_32] : memref<9x8x8xf32, #tpu.memory_space<vmem>>, vector<1x8x8xf32>
    %58 = vector.shape_cast %57 : vector<1x8x8xf32> to vector<8x8xf32>
    %cst_33 = arith.constant dense<0.000000e+00> : vector<8x256xf32>
    %59 = tpu.matmul %58, %56, %cst_33 {dimension_numbers = #tpu.dot_dimension_numbers<[1], [0], [0], [1], [0, 0, 1, 1], [], []>} : vector<8x8xf32>, vector<8x256xf32>, vector<8x256xf32> -> vector<8x256xf32>
    %60 = arith.addf %53, %59 : vector<8x256xf32>
    %c0_34 = arith.constant 0 : index
    %c17_35 = arith.constant 17 : index
    %61 = vector.load %arg4[%c0_34, %c17_35] : memref<8x290xf32, #tpu.memory_space<vmem>>, vector<8x256xf32>
    %c4_36 = arith.constant 4 : index
    %c0_37 = arith.constant 0 : index
    %c0_38 = arith.constant 0 : index
    %62 = vector.load %arg2[%c4_36, %c0_37, %c0_38] : memref<9x8x8xf32, #tpu.memory_space<vmem>>, vector<1x8x8xf32>
    %63 = vector.shape_cast %62 : vector<1x8x8xf32> to vector<8x8xf32>
    %cst_39 = arith.constant dense<0.000000e+00> : vector<8x256xf32>
    %64 = tpu.matmul %63, %61, %cst_39 {dimension_numbers = #tpu.dot_dimension_numbers<[1], [0], [0], [1], [0, 0, 1, 1], [], []>} : vector<8x8xf32>, vector<8x256xf32>, vector<8x256xf32> -> vector<8x256xf32>
    %65 = arith.addf %60, %64 : vector<8x256xf32>
    %c0_40 = arith.constant 0 : index
    %c18 = arith.constant 18 : index
    %66 = vector.load %arg4[%c0_40, %c18] : memref<8x290xf32, #tpu.memory_space<vmem>>, vector<8x256xf32>
    %67 = vector.broadcast %33 : vector<1x256xf32> to vector<8x256xf32>
    %68 = arith.mulf %66, %67 : vector<8x256xf32>
    %c5 = arith.constant 5 : index
    %c0_41 = arith.constant 0 : index
    %c0_42 = arith.constant 0 : index
    %69 = vector.load %arg2[%c5, %c0_41, %c0_42] : memref<9x8x8xf32, #tpu.memory_space<vmem>>, vector<1x8x8xf32>
    %70 = vector.shape_cast %69 : vector<1x8x8xf32> to vector<8x8xf32>
    %cst_43 = arith.constant dense<0.000000e+00> : vector<8x256xf32>
    %71 = tpu.matmul %70, %68, %cst_43 {dimension_numbers = #tpu.dot_dimension_numbers<[1], [0], [0], [1], [0, 0, 1, 1], [], []>} : vector<8x8xf32>, vector<8x256xf32>, vector<8x256xf32> -> vector<8x256xf32>
    %72 = arith.addf %65, %71 : vector<8x256xf32>
    %c0_44 = arith.constant 0 : index
    %c32 = arith.constant 32 : index
    %73 = vector.load %arg4[%c0_44, %c32] : memref<8x290xf32, #tpu.memory_space<vmem>>, vector<8x256xf32>
    %74 = vector.broadcast %29 : vector<1x256xf32> to vector<8x256xf32>
    %75 = arith.mulf %73, %74 : vector<8x256xf32>
    %c6 = arith.constant 6 : index
    %c0_45 = arith.constant 0 : index
    %c0_46 = arith.constant 0 : index
    %76 = vector.load %arg2[%c6, %c0_45, %c0_46] : memref<9x8x8xf32, #tpu.memory_space<vmem>>, vector<1x8x8xf32>
    %77 = vector.shape_cast %76 : vector<1x8x8xf32> to vector<8x8xf32>
    %cst_47 = arith.constant dense<0.000000e+00> : vector<8x256xf32>
    %78 = tpu.matmul %77, %75, %cst_47 {dimension_numbers = #tpu.dot_dimension_numbers<[1], [0], [0], [1], [0, 0, 1, 1], [], []>} : vector<8x8xf32>, vector<8x256xf32>, vector<8x256xf32> -> vector<8x256xf32>
    %79 = arith.addf %72, %78 : vector<8x256xf32>
    %c0_48 = arith.constant 0 : index
    %c33 = arith.constant 33 : index
    %80 = vector.load %arg4[%c0_48, %c33] : memref<8x290xf32, #tpu.memory_space<vmem>>, vector<8x256xf32>
    %c7 = arith.constant 7 : index
    %c0_49 = arith.constant 0 : index
    %c0_50 = arith.constant 0 : index
    %81 = vector.load %arg2[%c7, %c0_49, %c0_50] : memref<9x8x8xf32, #tpu.memory_space<vmem>>, vector<1x8x8xf32>
    %82 = vector.shape_cast %81 : vector<1x8x8xf32> to vector<8x8xf32>
    %cst_51 = arith.constant dense<0.000000e+00> : vector<8x256xf32>
    %83 = tpu.matmul %82, %80, %cst_51 {dimension_numbers = #tpu.dot_dimension_numbers<[1], [0], [0], [1], [0, 0, 1, 1], [], []>} : vector<8x8xf32>, vector<8x256xf32>, vector<8x256xf32> -> vector<8x256xf32>
    %84 = arith.addf %79, %83 : vector<8x256xf32>
    %c0_52 = arith.constant 0 : index
    %c34 = arith.constant 34 : index
    %85 = vector.load %arg4[%c0_52, %c34] : memref<8x290xf32, #tpu.memory_space<vmem>>, vector<8x256xf32>
    %86 = vector.broadcast %33 : vector<1x256xf32> to vector<8x256xf32>
    %87 = arith.mulf %85, %86 : vector<8x256xf32>
    %c8 = arith.constant 8 : index
    %c0_53 = arith.constant 0 : index
    %c0_54 = arith.constant 0 : index
    %88 = vector.load %arg2[%c8, %c0_53, %c0_54] : memref<9x8x8xf32, #tpu.memory_space<vmem>>, vector<1x8x8xf32>
    %89 = vector.shape_cast %88 : vector<1x8x8xf32> to vector<8x8xf32>
    %cst_55 = arith.constant dense<0.000000e+00> : vector<8x256xf32>
    %90 = tpu.matmul %89, %87, %cst_55 {dimension_numbers = #tpu.dot_dimension_numbers<[1], [0], [0], [1], [0, 0, 1, 1], [], []>} : vector<8x8xf32>, vector<8x256xf32>, vector<8x256xf32> -> vector<8x256xf32>
    %91 = arith.addf %84, %90 : vector<8x256xf32>
    %c0_56 = arith.constant 0 : index
    %c0_57 = arith.constant 0 : index
    %c0_58 = arith.constant 0 : index
    %92 = vector.load %arg3[%c0_56, %c0_57, %c0_58] : memref<1x8x256xf32, #tpu.memory_space<vmem>>, vector<1x8x256xf32>
    %93 = vector.shape_cast %92 : vector<1x8x256xf32> to vector<8x256xf32>
    %94 = vector.shape_cast %91 : vector<8x256xf32> to vector<1x8x256xf32>
    tpu.vector_store %arg3[%c0_56, %c0_57, %c0_58], %94 {strides = array<i32>} : memref<1x8x256xf32, #tpu.memory_space<vmem>>, vector<1x8x256xf32>,
    return
  }
  func.func @transform_0(%arg0: i32) -> (i32, i32, i32) {
    %c0_i32 = arith.constant 0 : i32
    %c0_i32_0 = arith.constant 0 : i32
    %c0_i32_1 = arith.constant 0 : i32
    return %arg0, %c0_i32, %c0_i32_0 : i32, i32, i32
  }
  func.func @transform_1(%arg0: i32) -> (i32, i32, i32) {
    %c0_i32 = arith.constant 0 : i32
    %c0_i32_0 = arith.constant 0 : i32
    %c0_i32_1 = arith.constant 0 : i32
    %c0_i32_2 = arith.constant 0 : i32
    return %c0_i32, %c0_i32_0, %c0_i32_1 : i32, i32, i32
  }
  func.func @transform_2(%arg0: i32) -> (i32, i32, i32) {
    %c0_i32 = arith.constant 0 : i32
    %c0_i32_0 = arith.constant 0 : i32
    %c0_i32_1 = arith.constant 0 : i32
    return %arg0, %c0_i32, %c0_i32_0 : i32, i32, i32
  }
}

</mosaic_0001>

<llo_original>
// kernel: mul.8
$region0: #{mul.8}
  %s0 = inlined_call_operand.vmem [shape: f32[3,3,4], index: 0, kind: input, shape index: {}]
  %s1 = inlined_call_operand.vmem [shape: f32[9,4], index: 1, kind: output, shape index: {}]
  $region1: #{mul.8} parent=0
    #allocation0 [shape = 'u8[4096]{0}', space=vmem, size = 0x1000, scoped, tag = 'scoped mem for output reshape']
    #allocation1 [shape = 'u8[16384]{0}', space=vmem, size = 0x4000, scoped, tag = 'scoped mem for input reshape']
    %s3 = ssub.s32 16, 1
    %s4 = scalar_lea.vmem %s0, 12
    %v5 = vld [vmem:[%s4] sm:%s3]
    %s6 = scalar_lea.vmem [#allocation1], 24
    %7 = vst [vmem:[%s6] sm:%s3] %v5
    %s8 = scalar_lea.vmem %s0, 8
    %v9 = vld [vmem:[%s8] sm:%s3]
    %s10 = scalar_lea.vmem [#allocation1], 16
    %11 = vst [vmem:[%s10] sm:%s3] %v9
    %s12 = scalar_lea.vmem %s0, 4
    %v13 = vld [vmem:[%s12] sm:%s3]
    %s14 = scalar_lea.vmem [#allocation1], 8
    %15 = vst [vmem:[%s14] sm:%s3] %v13
    %v16 = vld [vmem:[%s0] sm:%s3]
    %17 = vst [vmem:[#allocation1] sm:%s3] %v16
    %v18 = vld [vmem:[#allocation1] ss:$8 sm:$0xf]
    %vm19 = vcmask 23552
    %20 = vst.msk [vmem:[#allocation0] sm:$0xf] %vm19, %v18
    %s21 = scalar_lea.vmem [#allocation1], 2
    %v22 = vld [vmem:[%s21] ss:$8 sm:$0xf]
    %23 = vrot.lane.b32.xlu0 %v22, 6
    %v24 = vpop.permute.xlu0 %23
    %vm25 = vcmask 72752
    %26 = vst.msk [vmem:[#allocation0] sm:$0xf] %vm25, %v24
    %s27 = scalar_lea.vmem [#allocation1], 1
    %v28 = vld [vmem:[%s27] ss:$8 sm:$0xf]
    %29 = vrot.lane.b32.xlu0 %v28, 3
    %v30 = vpop.permute.xlu0 %29
    %vm31 = vcmask 48152
    %32 = vst.msk [vmem:[#allocation0] sm:$0xf] %vm31, %v30
    %s34 = ssub.s32 16, 1
    %v35 = vld [vmem:[#allocation0] sm:%s34]
    %s37 = ssub.s32 16, 1
    %38 = vst [vmem:[%s1] sm:%s37] %v35

// kernel: depthwise_separable_conv.1
$region0: #{depthwise_separable_conv.1}
  #allocation0 [shape = 'u32[]', space=smem, size = 0x4, offset = 0x4, fixed_abs, tag = 'smem constant byte address 0x4 - core index']
  #allocation1 [shape = 'u32[72,128]{1,0:T(1,128)}', space=vmem, size = 0x9000, scoped, tag = 'internal scratch']
  #allocation2 [shape = 'f32[8,290]{1,0:T(8,128)}', space=vmem, size = 0x3000, scoped, tag = 'scratch operand']
  %s0 = inlined_call_operand.vmem [shape: f32[2,4,256], index: 0, kind: input, shape index: {}]
  %s1 = inlined_call_operand.vmem [shape: f32[9,8,8], index: 1, kind: input, shape index: {}]
  %s2 = inlined_call_operand.vmem [shape: f32[2,8,256], index: 2, kind: output, shape index: {}]
  %s3 = sld [smem:[#allocation0]]
  $region41: #{depthwise_separable_conv.1} parent=0
    _
  %s5 = ssub.s32 1, %s3
  %s6 = scalar_select 0, %s5, %s3
  loop: start=0, step=1, limit=4
  $region2: #{depthwise_separable_conv.1} parent=0 // loop_pre_header
    _
  $region3: #{depthwise_separable_conv.1} parent=0 // loop_header
    %s8 = sphi 0, %s12
    %p9 = scmp.ge.s32.totalorder %s8, 4
    %s18 = sphi 0, %s20
    %s21 = sphi 0, %s18
    %s22 = sphi 0, %s21
    %s38 = sphi 0, %s22
    %s42 = sphi 0, %s42
    %s44 = sphi 0, %s42
    %s45 = sphi 0, %s44
    %s59 = sphi 0, %s45
    %s65 = sphi 0, %s67
    %s68 = sphi 0, %s65
    %s69 = sphi 0, %s68
    %s85 = sphi 0, %s69
  $region4: #{depthwise_separable_conv.1} parent=0 // loop_header_branch
    %11 = sbr.rel (%p9) target = $region8
  $region5: #{depthwise_separable_conv.1} parent=0 // loop_body
    %s13 = ssub.s32 %s8, 1
    %s14 = ssub.s32 %s8, 2
    %s15 = sadd.s32 %s8, 1
    %s16 = ssub.s32 %s8, %s15
    %p17 = scmp.eq.s32.totalorder %s16, 0
    %s19 = sadd.s32 %s18, 1
    %s20 = scalar_select %p17, %s18, %s19
    %p23 = pneg %p17
    %p24 = scmp.eq.s32.totalorder %s8, 1
    %p25 = por %p23, %p24
    %p26 = scmp.ne.s32.totalorder %s18, %s21
    %p27 = scmp.eq.s32.totalorder %s8, 0
    %p28 = por %p26, %p27
    %p29 = scmp.ne.s32.totalorder %s18, %s21
    %p30 = scmp.eq.s32.totalorder %s13, 1
    %p31 = por %p29, %p30
    %p32 = scmp.ne.s32.totalorder %s21, %s22
    %p33 = scmp.eq.s32.totalorder %s13, 0
    %p34 = por %p32, %p33
    %p35 = scmp.ne.s32.totalorder %s21, %s22
    %p36 = scmp.eq.s32.totalorder %s14, 1
    %p37 = por %p35, %p36
    %p39 = scmp.ne.s32.totalorder %s22, %s38
    %p40 = scmp.eq.s32.totalorder %s14, 0
    %p41 = por %p39, %p40
    %s43 = sadd.s32 %s42, 1
    %p46 = scmp.eq.s32.totalorder %s8, 1
    %p47 = scmp.ne.s32.totalorder %s42, %s44
    %p48 = scmp.eq.s32.totalorder %s8, 0
    %p49 = por %p47, %p48
    %p50 = scmp.ne.s32.totalorder %s42, %s44
    %p51 = scmp.eq.s32.totalorder %s13, 1
    %p52 = por %p50, %p51
    %p53 = scmp.ne.s32.totalorder %s44, %s45
    %p54 = scmp.eq.s32.totalorder %s13, 0
    %p55 = por %p53, %p54
    %p56 = scmp.ne.s32.totalorder %s44, %s45
    %p57 = scmp.eq.s32.totalorder %s14, 1
    %p58 = por %p56, %p57
    %p60 = scmp.ne.s32.totalorder %s45, %s59
    %p61 = scmp.eq.s32.totalorder %s14, 0
    %p62 = por %p60, %p61
    %s63 = ssub.s32 %s8, %s15
    %p64 = scmp.eq.s32.totalorder %s63, 0
    %s66 = sadd.s32 %s65, 1
    %s67 = scalar_select %p64, %s65, %s66
    %p70 = pneg %p64
    %p71 = scmp.eq.s32.totalorder %s8, 1
    %p72 = por %p70, %p71
    %p73 = scmp.ne.s32.totalorder %s65, %s68
    %p74 = scmp.eq.s32.totalorder %s8, 0
    %p75 = por %p73, %p74
    %p76 = scmp.ne.s32.totalorder %s65, %s68
    %p77 = scmp.eq.s32.totalorder %s13, 1
    %p78 = por %p76, %p77
    %p79 = scmp.ne.s32.totalorder %s68, %s69
    %p80 = scmp.eq.s32.totalorder %s13, 0
    %p81 = por %p79, %p80
    %p82 = scmp.ne.s32.totalorder %s68, %s69
    %p83 = scmp.eq.s32.totalorder %s14, 1
    %p84 = por %p82, %p83
    %p86 = scmp.ne.s32.totalorder %s69, %s85
    %p87 = scmp.eq.s32.totalorder %s14, 0
    %p88 = por %p86, %p87
    %p89 = scmp.le.s32.totalorder 1, %s8
    %p90 = scmp.lt.s32.totalorder %s8, 3
    %p91 = pnand %p89, %p90
    %p92 = pneg %p91
    // Predicated region
    $region9: #{depthwise_separable_conv.1} parent=5 // pred_check
      _
    $region10: #{depthwise_separable_conv.1} parent=5 // pred_check_branch
      %94 = sbr.rel (%p91) target = $region12
    $region11: #{depthwise_separable_conv.1} parent=5 // pred_region
      %s95 = ssub.s32 %s8, 1
      // Predicated region
      $region13: #{depthwise_separable_conv.1} parent=11 // pred_check
        %p96 = pneg %p55
      $region14: #{depthwise_separable_conv.1} parent=11 // pred_check_branch
        %98 = sbr.rel (%p96) target = $region16
      $region15: #{depthwise_separable_conv.1} parent=11 // pred_region
        _
      $region16: #{depthwise_separable_conv.1} parent=11 // pred_fallthru
        _
    $region12: #{depthwise_separable_conv.1} parent=5 // pred_fallthru
      _
    %p99 = scmp.lt.s32.totalorder %s8, 2
    // Predicated region
    $region17: #{depthwise_separable_conv.1} parent=5 // pred_check
      %p100 = pneg %p99
    $region18: #{depthwise_separable_conv.1} parent=5 // pred_check_branch
      %102 = sbr.rel (%p100) target = $region20
    $region19: #{depthwise_separable_conv.1} parent=5 // pred_region
      // Predicated region
      $region21: #{depthwise_separable_conv.1} parent=19 // pred_check
        %p103 = pneg %p28
      $region22: #{depthwise_separable_conv.1} parent=19 // pred_check_branch
        %105 = sbr.rel (%p103) target = $region24
      $region23: #{depthwise_separable_conv.1} parent=19 // pred_region
        %p106 = scmp.lt.s32.totalorder %s8, 1
        %s107 = scalar_select %p106, %s8, 1
        %s108 = smul.addr %s107, 2
        %s109 = smul.addr %s108, 4
        %s110 = scalar_lea.vmem %s0, %s109
      $region24: #{depthwise_separable_conv.1} parent=19 // pred_fallthru
        _
    $region20: #{depthwise_separable_conv.1} parent=5 // pred_fallthru
      _
    %p111 = scmp.le.s32.totalorder 1, %s8
    %p112 = scmp.lt.s32.totalorder %s8, 3
    %p113 = pnand %p111, %p112
    %p114 = pneg %p113
    // Predicated region
    $region25: #{depthwise_separable_conv.1} parent=5 // pred_check
      _
    $region26: #{depthwise_separable_conv.1} parent=5 // pred_check_branch
      %116 = sbr.rel (%p113) target = $region28
    $region27: #{depthwise_separable_conv.1} parent=5 // pred_region
      %s117 = ssub.s32 %s8, 1
      %p118 = scmp.lt.s32.totalorder %s13, 1
      %s119 = scalar_select %p118, %s13, 1
      %s120 = smul.addr %s119, 2
      %s121 = smul.addr %s120, 4
      %s122 = scalar_lea.vmem %s0, %s121
      %p123 = pneg %p34
      %p124 = pneg %p31
      %p125 = pneg %p55
      %p126 = pneg %p52
      %p127 = pneg %p81
      %p128 = pneg %p78
      %p129 = scmp.lt.s32.totalorder %s13, 1
      %s130 = scalar_select %p129, %s13, 1
      %s131 = smul.addr %s130, 2
      %s132 = smul.addr %s131, 8
      %s133 = scalar_lea.vmem %s2, %s132
      %p134 = scmp.lt.s32.totalorder %s13, 1
      %s135 = scalar_select %p134, %s13, 1
      %s136 = smul.addr %s135, 2
      %s137 = smul.addr %s136, 4
      %s138 = scalar_lea.vmem %s0, %s137
      %p139 = scmp.lt.s32.totalorder %s13, 1
      %s140 = scalar_select %p139, %s13, 1
      %s141 = smul.addr %s140, 2
      %s142 = smul.addr %s141, 8
      %s143 = scalar_lea.vmem %s2, %s142
      %vm144 = vcmask 138240
      %145 = vst.msk [vmem:[#allocation2] sm:$0xff] %vm144, 0.0
      %vm146 = vcmask 277640
      %147 = vst.msk [vmem:[#allocation2 + $0x10] sm:$0xff] %vm146, 0.0
      %148 = vst [vmem:[#allocation2] sm:$0xf0] 0.0
      %149 = vst [vmem:[#allocation2 + $0x8] sm:$0xf0] 0.0
      %vm150 = vcmask 277508
      %151 = vst.msk [vmem:[#allocation2 + $0x10] sm:$0xf0] %vm150, 0.0
      %v152 = vld [vmem:[%s138] sm:$0xff]
      %154 = vst [vmem:[#allocation1] ss:$2 sm:$0xff] %v152
      %v155 = vld.sshfl [vmem:[#allocation1] sm:$0xff pattern:$0x75316420]
      %v156 = vld.sshfl [vmem:[#allocation1 + $0x8] sm:$0xff pattern:$0x75316420]
      %157 = vrot.lane.b32.xlu0 %v155, 17
      %v158 = vpop.permute.xlu0 %157
      %159 = vrot.lane.b32.xlu0 %v156, 17
      %v160 = vpop.permute.xlu0 %159
      %v161 = vsel %vm144, %v158, %v160
      %vm165 = vcmask 1043592
      %166 = vst.msk [vmem:[#allocation2] sm:$0xf] %vm165, %v158
      %167 = vst [vmem:[#allocation2 + $0x8] sm:$0xf] %v161
      %vm168 = vcmask 134144
      %169 = vst.msk [vmem:[#allocation2 + $0x10] sm:$0xf] %vm168, %v160
      %v170 = vlaneseq
      %v171 = vand.u32 %v170, 127
      %v172 = vadd.s32 %v171, 128
      %vm173 = vcmp.lt.s32.totalorder %v171, 0
      %v174 = vsub.s32 0, %v171
      %v175 = vsel %vm173, %v174, %v171
      %v176 = vshrl.u32 %v175, 4
      %v177 = vand.u32 %v175, 15
      %v178 = vsub.s32 0, %v177
      %v179 = vsel %vm173, %v178, %v177
      %vm180 = vcmp.lt.s32.totalorder %v172, 0
      %v181 = vsub.s32 0, %v172
      %v182 = vsel %vm180, %v181, %v172
      %v183 = vshrl.u32 %v182, 4
      %v184 = vand.u32 %v182, 15
      %v185 = vsub.s32 0, %v184
      %v186 = vsel %vm180, %v185, %v184
      %vm187 = vcmp.ne.s32.totalorder %v179, 0
      %vm188 = vcmp.ne.s32.totalorder %v186, 0
      %vm189 = vcmp.lt.s32.totalorder %v179, 0
      %vm190 = vcmp.lt.s32.totalorder %v186, 0
      %vm191 = vmand %vm189, %vm187
      %vm192 = vmand %vm190, %vm188
      %v193 = vadd.s32 %v179, 16
      %v194 = vadd.s32 %v186, 16
      %v195 = vsel %vm191, %v193, %v179
      %v196 = vsel %vm192, %v194, %v186
      %vm197 = vcmp.ne.s32.totalorder %v195, 0
      %vm198 = vcmp.ne.s32.totalorder %v196, 0
      %v199 = vsel %vm197, 1, 0
      %v200 = vsel %vm198, 1, 0
      %v201 = vcvt.s32.f32 %v199
      %v202 = vcvt.s32.f32 %v200
      %vm203 = vcmp.ne.s32.totalorder %v195, 15
      %vm204 = vcmp.ne.s32.totalorder %v196, 15
      %v205 = vsel %vm203, 1, 0
      %v206 = vsel %vm204, 1, 0
      %v207 = vcvt.s32.f32 %v205
      %v208 = vcvt.s32.f32 %v206
      %v209 = vld [vmem:[#allocation2] sm:$0xff]
      %v210 = vld [vmem:[#allocation2 + $0x8] sm:$0xff]
      %v211 = vmul.f32 %v209, %v201
      %v212 = vmul.f32 %v210, %v202
      %v213 = vld [vmem:[%s1] sm:$0xff]
      %v214 = vld [vmem:[#allocation2 + $0x10] sm:$0xff]
      %s215 = scalar_lea.vmem %s1, 8
      %v216 = vld [vmem:[%s215] sm:$0xff]
      %220 = vrot.lane.b32.xlu0 %v209, 127
      %v221 = vpop.permute.xlu0 %220
      %222 = vrot.lane.b32.xlu0 %v210, 127
      %v223 = vpop.permute.xlu0 %222
      %224 = vrot.lane.b32.xlu0 %v214, 127
      %v225 = vpop.permute.xlu0 %224
      %vm226 = vcmask 1039360
      %v227 = vsel %vm226, %v221, %v223
      %v228 = vsel %vm226, %v223, %v225
      %vm231 = vcmask 64512
      %v233 = vsel %vm231, %v216, 0
      %235 = vmatpush.msra.mxu0 0.0
      %236 = vmatpush.msra.mxu0 0.0
      %237 = vmatpush.msra.mxu0 0.0
      %238 = vmatpush.msra.mxu0 0.0
      %239 = vmatpush.msra.mxu0 0.0
      %240 = vmatpush.msra.mxu0 0.0
      %241 = vmatpush.msra.mxu0 0.0
      %242 = vmatpush.msra.mxu0 0.0
      %243 = vmatpush.msra.mxu0 0.0
      %244 = vmatpush.msra.mxu0 0.0
      %245 = vmatpush.msra.mxu0 0.0
      %246 = vmatpush.msra.mxu0 0.0
      %247 = vmatpush.msra.mxu0 0.0
      %248 = vmatpush.msra.mxu0 0.0
      %249 = vmatpush.msra.mxu0 0.0
      %250 = vmatpush.msra.mxu0 %v227
      %251 = vmatmul.f32.gmra.mxu0 %v233
      %v252 = vpop.f32.mrf.mxu0
      %v253 = vadd.f32 0.0, %v252
      %254 = vdwg.mxu0
      %255 = vmatpush.msra.mxu0 0.0
      %256 = vmatpush.msra.mxu0 0.0
      %257 = vmatpush.msra.mxu0 0.0
      %258 = vmatpush.msra.mxu0 0.0
      %259 = vmatpush.msra.mxu0 0.0
      %260 = vmatpush.msra.mxu0 0.0
      %261 = vmatpush.msra.mxu0 0.0
      %262 = vmatpush.msra.mxu0 0.0
      %263 = vmatpush.msra.mxu0 0.0
      %264 = vmatpush.msra.mxu0 0.0
      %265 = vmatpush.msra.mxu0 0.0
      %266 = vmatpush.msra.mxu0 0.0
      %267 = vmatpush.msra.mxu0 0.0
      %268 = vmatpush.msra.mxu0 0.0
      %269 = vmatpush.msra.mxu0 0.0
      %270 = vmatpush.msra.mxu0 %v228
      %271 = vmatmul.f32.gmra.mxu0 %v233
      %v272 = vpop.f32.mrf.mxu0
      %v273 = vadd.f32 0.0, %v272
      %274 = vdwg.mxu0
      %v276 = vsel %vm231, %v213, 0
      %278 = vmatpush.msra.mxu0 0.0
      %279 = vmatpush.msra.mxu0 0.0
      %280 = vmatpush.msra.mxu0 0.0
      %281 = vmatpush.msra.mxu0 0.0
      %282 = vmatpush.msra.mxu0 0.0
      %283 = vmatpush.msra.mxu0 0.0
      %284 = vmatpush.msra.mxu0 0.0
      %285 = vmatpush.msra.mxu0 0.0
      %286 = vmatpush.msra.mxu0 0.0
      %287 = vmatpush.msra.mxu0 0.0
      %288 = vmatpush.msra.mxu0 0.0
      %289 = vmatpush.msra.mxu0 0.0
      %290 = vmatpush.msra.mxu0 0.0
      %291 = vmatpush.msra.mxu0 0.0
      %292 = vmatpush.msra.mxu0 0.0
      %293 = vmatpush.msra.mxu0 %v211
      %294 = vmatmul.f32.gmra.mxu0 %v276
      %v295 = vpop.f32.mrf.mxu0
      %v296 = vadd.f32 %v253, %v295
      %297 = vdwg.mxu0
      %298 = vmatpush.msra.mxu0 0.0
      %299 = vmatpush.msra.mxu0 0.0
      %300 = vmatpush.msra.mxu0 0.0
      %301 = vmatpush.msra.mxu0 0.0
      %302 = vmatpush.msra.mxu0 0.0
      %303 = vmatpush.msra.mxu0 0.0
      %304 = vmatpush.msra.mxu0 0.0
      %305 = vmatpush.msra.mxu0 0.0
      %306 = vmatpush.msra.mxu0 0.0
      %307 = vmatpush.msra.mxu0 0.0
      %308 = vmatpush.msra.mxu0 0.0
      %309 = vmatpush.msra.mxu0 0.0
      %310 = vmatpush.msra.mxu0 0.0
      %311 = vmatpush.msra.mxu0 0.0
      %312 = vmatpush.msra.mxu0 0.0
      %313 = vmatpush.msra.mxu0 %v212
      %314 = vmatmul.f32.gmra.mxu0 %v276
      %v315 = vpop.f32.mrf.mxu0
      %v316 = vadd.f32 %v273, %v315
      %317 = vdwg.mxu0
      %320 = vrot.lane.b32.xlu0 %v207, 2
      %v321 = vpop.permute.xlu0 %320
      %322 = vrot.lane.b32.xlu0 %v208, 2
      %v323 = vpop.permute.xlu0 %322
      %vm324 = vcmask 15360
      %v325 = vsel %vm324, %v321, %v323
      %v329 = vmul.f32 %v209, %v321
      %v330 = vmul.f32 %v210, %v325
      %v331 = vmul.f32 %v214, %v323
      %s332 = scalar_lea.vmem %s1, 16
      %v333 = vld [vmem:[%s332] sm:$0xff]
      %337 = vrot.lane.b32.xlu0 %v329, 126
      %v338 = vpop.permute.xlu0 %337
      %339 = vrot.lane.b32.xlu0 %v330, 126
      %v340 = vpop.permute.xlu0 %339
      %341 = vrot.lane.b32.xlu0 %v331, 126
      %v342 = vpop.permute.xlu0 %341
      %vm343 = vcmask 1031168
      %v344 = vsel %vm343, %v338, %v340
      %v345 = vsel %vm343, %v340, %v342
      %v349 = vsel %vm231, %v333, 0
      %351 = vmatpush.msra.mxu0 0.0
      %352 = vmatpush.msra.mxu0 0.0
      %353 = vmatpush.msra.mxu0 0.0
      %354 = vmatpush.msra.mxu0 0.0
      %355 = vmatpush.msra.mxu0 0.0
      %356 = vmatpush.msra.mxu0 0.0
      %357 = vmatpush.msra.mxu0 0.0
      %358 = vmatpush.msra.mxu0 0.0
      %359 = vmatpush.msra.mxu0 0.0
      %360 = vmatpush.msra.mxu0 0.0
      %361 = vmatpush.msra.mxu0 0.0
      %362 = vmatpush.msra.mxu0 0.0
      %363 = vmatpush.msra.mxu0 0.0
      %364 = vmatpush.msra.mxu0 0.0
      %365 = vmatpush.msra.mxu0 0.0
      %366 = vmatpush.msra.mxu0 %v344
      %367 = vmatmul.f32.gmra.mxu0 %v349
      %v368 = vpop.f32.mrf.mxu0
      %v369 = vadd.f32 0.0, %v368
      %370 = vdwg.mxu0
      %371 = vmatpush.msra.mxu0 0.0
      %372 = vmatpush.msra.mxu0 0.0
      %373 = vmatpush.msra.mxu0 0.0
      %374 = vmatpush.msra.mxu0 0.0
      %375 = vmatpush.msra.mxu0 0.0
      %376 = vmatpush.msra.mxu0 0.0
      %377 = vmatpush.msra.mxu0 0.0
      %378 = vmatpush.msra.mxu0 0.0
      %379 = vmatpush.msra.mxu0 0.0
      %380 = vmatpush.msra.mxu0 0.0
      %381 = vmatpush.msra.mxu0 0.0
      %382 = vmatpush.msra.mxu0 0.0
      %383 = vmatpush.msra.mxu0 0.0
      %384 = vmatpush.msra.mxu0 0.0
      %385 = vmatpush.msra.mxu0 0.0
      %386 = vmatpush.msra.mxu0 %v345
      %387 = vmatmul.f32.gmra.mxu0 %v349
      %v388 = vpop.f32.mrf.mxu0
      %v389 = vadd.f32 0.0, %v388
      %390 = vdwg.mxu0
      %v391 = vadd.f32 %v296, %v369
      %v392 = vadd.f32 %v316, %v389
      %395 = vrot.lane.b32.xlu0 %v201, 16
      %v396 = vpop.permute.xlu0 %395
      %397 = vrot.lane.b32.xlu0 %v202, 16
      %v398 = vpop.permute.xlu0 %397
      %vm399 = vcmask 130048
      %v400 = vsel %vm399, %v396, %v398
      %v404 = vmul.f32 %v209, %v396
      %v405 = vmul.f32 %v210, %v400
      %v406 = vmul.f32 %v214, %v398
      %s407 = scalar_lea.vmem %s1, 24
      %v408 = vld [vmem:[%s407] sm:$0xff]
      %412 = vrot.lane.b32.xlu0 %v404, 112
      %v413 = vpop.permute.xlu0 %412
      %414 = vrot.lane.b32.xlu0 %v405, 112
      %v415 = vpop.permute.xlu0 %414
      %416 = vrot.lane.b32.xlu0 %v406, 112
      %v417 = vpop.permute.xlu0 %416
      %vm418 = vcmask 916480
      %v419 = vsel %vm418, %v413, %v415
      %v420 = vsel %vm418, %v415, %v417
      %v424 = vsel %vm231, %v408, 0
      %426 = vmatpush.msra.mxu0 0.0
      %427 = vmatpush.msra.mxu0 0.0
      %428 = vmatpush.msra.mxu0 0.0
      %429 = vmatpush.msra.mxu0 0.0
      %430 = vmatpush.msra.mxu0 0.0
      %431 = vmatpush.msra.mxu0 0.0
      %432 = vmatpush.msra.mxu0 0.0
      %433 = vmatpush.msra.mxu0 0.0
      %434 = vmatpush.msra.mxu0 0.0
      %435 = vmatpush.msra.mxu0 0.0
      %436 = vmatpush.msra.mxu0 0.0
      %437 = vmatpush.msra.mxu0 0.0
      %438 = vmatpush.msra.mxu0 0.0
      %439 = vmatpush.msra.mxu0 0.0
      %440 = vmatpush.msra.mxu0 0.0
      %441 = vmatpush.msra.mxu0 %v419
      %442 = vmatmul.f32.gmra.mxu0 %v424
      %v443 = vpop.f32.mrf.mxu0
      %v444 = vadd.f32 0.0, %v443
      %445 = vdwg.mxu0
      %446 = vmatpush.msra.mxu0 0.0
      %447 = vmatpush.msra.mxu0 0.0
      %448 = vmatpush.msra.mxu0 0.0
      %449 = vmatpush.msra.mxu0 0.0
      %450 = vmatpush.msra.mxu0 0.0
      %451 = vmatpush.msra.mxu0 0.0
      %452 = vmatpush.msra.mxu0 0.0
      %453 = vmatpush.msra.mxu0 0.0
      %454 = vmatpush.msra.mxu0 0.0
      %455 = vmatpush.msra.mxu0 0.0
      %456 = vmatpush.msra.mxu0 0.0
      %457 = vmatpush.msra.mxu0 0.0
      %458 = vmatpush.msra.mxu0 0.0
      %459 = vmatpush.msra.mxu0 0.0
      %460 = vmatpush.msra.mxu0 0.0
      %461 = vmatpush.msra.mxu0 %v420
      %462 = vmatmul.f32.gmra.mxu0 %v424
      %v463 = vpop.f32.mrf.mxu0
      %v464 = vadd.f32 0.0, %v463
      %465 = vdwg.mxu0
      %v466 = vadd.f32 %v391, %v444
      %v467 = vadd.f32 %v392, %v464
      %s468 = scalar_lea.vmem %s1, 32
      %v469 = vld [vmem:[%s468] sm:$0xff]
      %470 = vrot.lane.b32.xlu0 %v209, 111
      %v471 = vpop.permute.xlu0 %470
      %472 = vrot.lane.b32.xlu0 %v210, 111
      %v473 = vpop.permute.xlu0 %472
      %474 = vrot.lane.b32.xlu0 %v214, 111
      %v475 = vpop.permute.xlu0 %474
      %vm476 = vcmask 908288
      %v477 = vsel %vm476, %v471, %v473
      %v478 = vsel %vm476, %v473, %v475
      %v482 = vsel %vm231, %v469, 0
      %484 = vmatpush.msra.mxu0 0.0
      %485 = vmatpush.msra.mxu0 0.0
      %486 = vmatpush.msra.mxu0 0.0
      %487 = vmatpush.msra.mxu0 0.0
      %488 = vmatpush.msra.mxu0 0.0
      %489 = vmatpush.msra.mxu0 0.0
      %490 = vmatpush.msra.mxu0 0.0
      %491 = vmatpush.msra.mxu0 0.0
      %492 = vmatpush.msra.mxu0 0.0
      %493 = vmatpush.msra.mxu0 0.0
      %494 = vmatpush.msra.mxu0 0.0
      %495 = vmatpush.msra.mxu0 0.0
      %496 = vmatpush.msra.mxu0 0.0
      %497 = vmatpush.msra.mxu0 0.0
      %498 = vmatpush.msra.mxu0 0.0
      %499 = vmatpush.msra.mxu0 %v477
      %500 = vmatmul.f32.gmra.mxu0 %v482
      %v501 = vpop.f32.mrf.mxu0
      %v502 = vadd.f32 0.0, %v501
      %503 = vdwg.mxu0
      %504 = vmatpush.msra.mxu0 0.0
      %505 = vmatpush.msra.mxu0 0.0
      %506 = vmatpush.msra.mxu0 0.0
      %507 = vmatpush.msra.mxu0 0.0
      %508 = vmatpush.msra.mxu0 0.0
      %509 = vmatpush.msra.mxu0 0.0
      %510 = vmatpush.msra.mxu0 0.0
      %511 = vmatpush.msra.mxu0 0.0
      %512 = vmatpush.msra.mxu0 0.0
      %513 = vmatpush.msra.mxu0 0.0
      %514 = vmatpush.msra.mxu0 0.0
      %515 = vmatpush.msra.mxu0 0.0
      %516 = vmatpush.msra.mxu0 0.0
      %517 = vmatpush.msra.mxu0 0.0
      %518 = vmatpush.msra.mxu0 0.0
      %519 = vmatpush.msra.mxu0 %v478
      %520 = vmatmul.f32.gmra.mxu0 %v482
      %v521 = vpop.f32.mrf.mxu0
      %v522 = vadd.f32 0.0, %v521
      %523 = vdwg.mxu0
      %v524 = vadd.f32 %v466, %v502
      %v525 = vadd.f32 %v467, %v522
      %526 = vrot.lane.b32.xlu0 %v207, 18
      %v527 = vpop.permute.xlu0 %526
      %528 = vrot.lane.b32.xlu0 %v208, 18
      %v529 = vpop.permute.xlu0 %528
      %vm530 = vcmask 146432
      %v531 = vsel %vm530, %v527, %v529
      %v535 = vmul.f32 %v209, %v527
      %v536 = vmul.f32 %v210, %v531
      %v537 = vmul.f32 %v214, %v529
      %s538 = scalar_lea.vmem %s1, 40
      %v539 = vld [vmem:[%s538] sm:$0xff]
      %543 = vrot.lane.b32.xlu0 %v535, 110
      %v544 = vpop.permute.xlu0 %543
      %545 = vrot.lane.b32.xlu0 %v536, 110
      %v546 = vpop.permute.xlu0 %545
      %547 = vrot.lane.b32.xlu0 %v537, 110
      %v548 = vpop.permute.xlu0 %547
      %vm549 = vcmask 900096
      %v550 = vsel %vm549, %v544, %v546
      %v551 = vsel %vm549, %v546, %v548
      %v555 = vsel %vm231, %v539, 0
      %557 = vmatpush.msra.mxu0 0.0
      %558 = vmatpush.msra.mxu0 0.0
      %559 = vmatpush.msra.mxu0 0.0
      %560 = vmatpush.msra.mxu0 0.0
      %561 = vmatpush.msra.mxu0 0.0
      %562 = vmatpush.msra.mxu0 0.0
      %563 = vmatpush.msra.mxu0 0.0
      %564 = vmatpush.msra.mxu0 0.0
      %565 = vmatpush.msra.mxu0 0.0
      %566 = vmatpush.msra.mxu0 0.0
      %567 = vmatpush.msra.mxu0 0.0
      %568 = vmatpush.msra.mxu0 0.0
      %569 = vmatpush.msra.mxu0 0.0
      %570 = vmatpush.msra.mxu0 0.0
      %571 = vmatpush.msra.mxu0 0.0
      %572 = vmatpush.msra.mxu0 %v550
      %573 = vmatmul.f32.gmra.mxu0 %v555
      %v574 = vpop.f32.mrf.mxu0
      %v575 = vadd.f32 0.0, %v574
      %576 = vdwg.mxu0
      %577 = vmatpush.msra.mxu0 0.0
      %578 = vmatpush.msra.mxu0 0.0
      %579 = vmatpush.msra.mxu0 0.0
      %580 = vmatpush.msra.mxu0 0.0
      %581 = vmatpush.msra.mxu0 0.0
      %582 = vmatpush.msra.mxu0 0.0
      %583 = vmatpush.msra.mxu0 0.0
      %584 = vmatpush.msra.mxu0 0.0
      %585 = vmatpush.msra.mxu0 0.0
      %586 = vmatpush.msra.mxu0 0.0
      %587 = vmatpush.msra.mxu0 0.0
      %588 = vmatpush.msra.mxu0 0.0
      %589 = vmatpush.msra.mxu0 0.0
      %590 = vmatpush.msra.mxu0 0.0
      %591 = vmatpush.msra.mxu0 0.0
      %592 = vmatpush.msra.mxu0 %v551
      %593 = vmatmul.f32.gmra.mxu0 %v555
      %v594 = vpop.f32.mrf.mxu0
      %v595 = vadd.f32 0.0, %v594
      %596 = vdwg.mxu0
      %v597 = vadd.f32 %v524, %v575
      %v598 = vadd.f32 %v525, %v595
      %599 = vrot.lane.b32.xlu0 %v201, 32
      %v600 = vpop.permute.xlu0 %599
      %601 = vrot.lane.b32.xlu0 %v202, 32
      %v602 = vpop.permute.xlu0 %601
      %vm603 = vcmask 261120
      %v604 = vsel %vm603, %v600, %v602
      %v608 = vmul.f32 %v209, %v600
      %v609 = vmul.f32 %v210, %v604
      %v610 = vmul.f32 %v214, %v602
      %s611 = scalar_lea.vmem %s1, 48
      %v612 = vld [vmem:[%s611] sm:$0xff]
      %616 = vrot.lane.b32.xlu0 %v608, 96
      %v617 = vpop.permute.xlu0 %616
      %618 = vrot.lane.b32.xlu0 %v609, 96
      %v619 = vpop.permute.xlu0 %618
      %620 = vrot.lane.b32.xlu0 %v610, 96
      %v621 = vpop.permute.xlu0 %620
      %vm622 = vcmask 785408
      %v623 = vsel %vm622, %v617, %v619
      %v624 = vsel %vm622, %v619, %v621
      %v628 = vsel %vm231, %v612, 0
      %630 = vmatpush.msra.mxu0 0.0
      %631 = vmatpush.msra.mxu0 0.0
      %632 = vmatpush.msra.mxu0 0.0
      %633 = vmatpush.msra.mxu0 0.0
      %634 = vmatpush.msra.mxu0 0.0
      %635 = vmatpush.msra.mxu0 0.0
      %636 = vmatpush.msra.mxu0 0.0
      %637 = vmatpush.msra.mxu0 0.0
      %638 = vmatpush.msra.mxu0 0.0
      %639 = vmatpush.msra.mxu0 0.0
      %640 = vmatpush.msra.mxu0 0.0
      %641 = vmatpush.msra.mxu0 0.0
      %642 = vmatpush.msra.mxu0 0.0
      %643 = vmatpush.msra.mxu0 0.0
      %644 = vmatpush.msra.mxu0 0.0
      %645 = vmatpush.msra.mxu0 %v623
      %646 = vmatmul.f32.gmra.mxu0 %v628
      %v647 = vpop.f32.mrf.mxu0
      %v648 = vadd.f32 0.0, %v647
      %649 = vdwg.mxu0
      %650 = vmatpush.msra.mxu0 0.0
      %651 = vmatpush.msra.mxu0 0.0
      %652 = vmatpush.msra.mxu0 0.0
      %653 = vmatpush.msra.mxu0 0.0
      %654 = vmatpush.msra.mxu0 0.0
      %655 = vmatpush.msra.mxu0 0.0
      %656 = vmatpush.msra.mxu0 0.0
      %657 = vmatpush.msra.mxu0 0.0
      %658 = vmatpush.msra.mxu0 0.0
      %659 = vmatpush.msra.mxu0 0.0
      %660 = vmatpush.msra.mxu0 0.0
      %661 = vmatpush.msra.mxu0 0.0
      %662 = vmatpush.msra.mxu0 0.0
      %663 = vmatpush.msra.mxu0 0.0
      %664 = vmatpush.msra.mxu0 0.0
      %665 = vmatpush.msra.mxu0 %v624
      %666 = vmatmul.f32.gmra.mxu0 %v628
      %v667 = vpop.f32.mrf.mxu0
      %v668 = vadd.f32 0.0, %v667
      %669 = vdwg.mxu0
      %v670 = vadd.f32 %v597, %v648
      %v671 = vadd.f32 %v598, %v668
      %s672 = scalar_lea.vmem %s1, 56
      %v673 = vld [vmem:[%s672] sm:$0xff]
      %674 = vrot.lane.b32.xlu0 %v209, 95
      %v675 = vpop.permute.xlu0 %674
      %676 = vrot.lane.b32.xlu0 %v210, 95
      %v677 = vpop.permute.xlu0 %676
      %678 = vrot.lane.b32.xlu0 %v214, 95
      %v679 = vpop.permute.xlu0 %678
      %vm680 = vcmask 777216
      %v681 = vsel %vm680, %v675, %v677
      %v682 = vsel %vm680, %v677, %v679
      %v686 = vsel %vm231, %v673, 0
      %688 = vmatpush.msra.mxu0 0.0
      %689 = vmatpush.msra.mxu0 0.0
      %690 = vmatpush.msra.mxu0 0.0
      %691 = vmatpush.msra.mxu0 0.0
      %692 = vmatpush.msra.mxu0 0.0
      %693 = vmatpush.msra.mxu0 0.0
      %694 = vmatpush.msra.mxu0 0.0
      %695 = vmatpush.msra.mxu0 0.0
      %696 = vmatpush.msra.mxu0 0.0
      %697 = vmatpush.msra.mxu0 0.0
      %698 = vmatpush.msra.mxu0 0.0
      %699 = vmatpush.msra.mxu0 0.0
      %700 = vmatpush.msra.mxu0 0.0
      %701 = vmatpush.msra.mxu0 0.0
      %702 = vmatpush.msra.mxu0 0.0
      %703 = vmatpush.msra.mxu0 %v681
      %704 = vmatmul.f32.gmra.mxu0 %v686
      %v705 = vpop.f32.mrf.mxu0
      %v706 = vadd.f32 0.0, %v705
      %707 = vdwg.mxu0
      %708 = vmatpush.msra.mxu0 0.0
      %709 = vmatpush.msra.mxu0 0.0
      %710 = vmatpush.msra.mxu0 0.0
      %711 = vmatpush.msra.mxu0 0.0
      %712 = vmatpush.msra.mxu0 0.0
      %713 = vmatpush.msra.mxu0 0.0
      %714 = vmatpush.msra.mxu0 0.0
      %715 = vmatpush.msra.mxu0 0.0
      %716 = vmatpush.msra.mxu0 0.0
      %717 = vmatpush.msra.mxu0 0.0
      %718 = vmatpush.msra.mxu0 0.0
      %719 = vmatpush.msra.mxu0 0.0
      %720 = vmatpush.msra.mxu0 0.0
      %721 = vmatpush.msra.mxu0 0.0
      %722 = vmatpush.msra.mxu0 0.0
      %723 = vmatpush.msra.mxu0 %v682
      %724 = vmatmul.f32.gmra.mxu0 %v686
      %v725 = vpop.f32.mrf.mxu0
      %v726 = vadd.f32 0.0, %v725
      %727 = vdwg.mxu0
      %v728 = vadd.f32 %v670, %v706
      %v729 = vadd.f32 %v671, %v726
      %730 = vrot.lane.b32.xlu0 %v207, 34
      %v731 = vpop.permute.xlu0 %730
      %732 = vrot.lane.b32.xlu0 %v208, 34
      %v733 = vpop.permute.xlu0 %732
      %vm734 = vcmask 277504
      %v735 = vsel %vm734, %v731, %v733
      %v739 = vmul.f32 %v209, %v731
      %v740 = vmul.f32 %v210, %v735
      %v741 = vmul.f32 %v214, %v733
      %s742 = scalar_lea.vmem %s1, 64
      %v743 = vld [vmem:[%s742] sm:$0xff]
      %747 = vrot.lane.b32.xlu0 %v739, 94
      %v748 = vpop.permute.xlu0 %747
      %749 = vrot.lane.b32.xlu0 %v740, 94
      %v750 = vpop.permute.xlu0 %749
      %751 = vrot.lane.b32.xlu0 %v741, 94
      %v752 = vpop.permute.xlu0 %751
      %vm753 = vcmask 769024
      %v754 = vsel %vm753, %v748, %v750
      %v755 = vsel %vm753, %v750, %v752
      %v759 = vsel %vm231, %v743, 0
      %761 = vmatpush.msra.mxu0 0.0
      %762 = vmatpush.msra.mxu0 0.0
      %763 = vmatpush.msra.mxu0 0.0
      %764 = vmatpush.msra.mxu0 0.0
      %765 = vmatpush.msra.mxu0 0.0
      %766 = vmatpush.msra.mxu0 0.0
      %767 = vmatpush.msra.mxu0 0.0
      %768 = vmatpush.msra.mxu0 0.0
      %769 = vmatpush.msra.mxu0 0.0
      %770 = vmatpush.msra.mxu0 0.0
      %771 = vmatpush.msra.mxu0 0.0
      %772 = vmatpush.msra.mxu0 0.0
      %773 = vmatpush.msra.mxu0 0.0
      %774 = vmatpush.msra.mxu0 0.0
      %775 = vmatpush.msra.mxu0 0.0
      %776 = vmatpush.msra.mxu0 %v754
      %777 = vmatmul.f32.gmra.mxu0 %v759
      %v778 = vpop.f32.mrf.mxu0
      %v779 = vadd.f32 0.0, %v778
      %780 = vdwg.mxu0
      %781 = vmatpush.msra.mxu0 0.0
      %782 = vmatpush.msra.mxu0 0.0
      %783 = vmatpush.msra.mxu0 0.0
      %784 = vmatpush.msra.mxu0 0.0
      %785 = vmatpush.msra.mxu0 0.0
      %786 = vmatpush.msra.mxu0 0.0
      %787 = vmatpush.msra.mxu0 0.0
      %788 = vmatpush.msra.mxu0 0.0
      %789 = vmatpush.msra.mxu0 0.0
      %790 = vmatpush.msra.mxu0 0.0
      %791 = vmatpush.msra.mxu0 0.0
      %792 = vmatpush.msra.mxu0 0.0
      %793 = vmatpush.msra.mxu0 0.0
      %794 = vmatpush.msra.mxu0 0.0
      %795 = vmatpush.msra.mxu0 0.0
      %796 = vmatpush.msra.mxu0 %v755
      %797 = vmatmul.f32.gmra.mxu0 %v759
      %v798 = vpop.f32.mrf.mxu0
      %v799 = vadd.f32 0.0, %v798
      %800 = vdwg.mxu0
      %v801 = vadd.f32 %v728, %v779
      %v802 = vadd.f32 %v729, %v799
      %803 = vst [vmem:[%s143] sm:$0xff] %v801
      %804 = vst [vmem:[%s143 + $0x8] sm:$0xff] %v802
      %p805 = scmp.lt.s32.totalorder %s13, 1
      %s806 = scalar_select %p805, %s13, 1
      %s807 = smul.addr %s806, 2
      %s808 = smul.addr %s807, 8
      %s809 = scalar_lea.vmem %s2, %s808
      // Predicated region
      $region29: #{depthwise_separable_conv.1} parent=27 // pred_check
        %p810 = pneg %p78
      $region30: #{depthwise_separable_conv.1} parent=27 // pred_check_branch
        %812 = sbr.rel (%p810) target = $region32
      $region31: #{depthwise_separable_conv.1} parent=27 // pred_region
        _
      $region32: #{depthwise_separable_conv.1} parent=27 // pred_fallthru
        _
    $region28: #{depthwise_separable_conv.1} parent=5 // pred_fallthru
      _
    %p813 = scmp.le.s32.totalorder 2, %s8
    // Predicated region
    $region33: #{depthwise_separable_conv.1} parent=5 // pred_check
      %p814 = pneg %p813
    $region34: #{depthwise_separable_conv.1} parent=5 // pred_check_branch
      %816 = sbr.rel (%p814) target = $region36
    $region35: #{depthwise_separable_conv.1} parent=5 // pred_region
      %s817 = ssub.s32 %s8, 2
      // Predicated region
      $region37: #{depthwise_separable_conv.1} parent=35 // pred_check
        %p818 = pneg %p84
      $region38: #{depthwise_separable_conv.1} parent=35 // pred_check_branch
        %820 = sbr.rel (%p818) target = $region40
      $region39: #{depthwise_separable_conv.1} parent=35 // pred_region
        %p821 = scmp.lt.s32.totalorder %s14, 1
        %s822 = scalar_select %p821, %s14, 1
        %s823 = smul.addr %s822, 2
        %s824 = smul.addr %s823, 8
        %s825 = scalar_lea.vmem %s2, %s824
      $region40: #{depthwise_separable_conv.1} parent=35 // pred_fallthru
        _
    $region36: #{depthwise_separable_conv.1} parent=5 // pred_fallthru
      _
  $region6: #{depthwise_separable_conv.1} parent=0 // loop_footer
    %s12 = sadd.s32 1, %s8
  $region7: #{depthwise_separable_conv.1} parent=0 // loop_footer_branch
    %7 = sbr.rel target = $region3
  $region8: #{depthwise_separable_conv.1} parent=0 // loop_exit
    _

</llo_original>
